<compile_context>
chip_gen: v6e
topology: v6e:2x2x1
jax: 0.10.0
libtpu: 0.0.40
codegen_flags: <defaults>
</compile_context>

<pallas_src>
from functools import partial

import jax
import jax.numpy as jnp
from jax.experimental import pallas as pl
from jax.experimental.pallas import tpu as pltpu

_LANE_COLS = 512       # lane-dense last dim (multiple of 128)
_TARGET_ROWS = 1024    # ~2 MiB f32 tiles; 4x double-buffered buffers ~ 8 MiB


def _round_up(a, b):
    return (a + b - 1) // b * b


def _rezero_kernel(fn, g_ref, x_ref, o_ref):
    # g_ref: (1,) f32 scalar in SMEM; x_ref / o_ref: (TM, L) tiles in VMEM.
    g = g_ref[0]
    y = fn(x_ref[...])
    o_ref[...] = (y.astype(jnp.float32) * g).astype(o_ref.dtype)


def rezero_forward(fn, x, g, *, target_rows=_TARGET_ROWS, lane_cols=_LANE_COLS):
    """Compute fn(x) * g with the hot path (fn + scale) fused in one kernel."""
    orig_shape = x.shape
    orig_dtype = x.dtype
    n = x.size
    itemsize = jnp.dtype(orig_dtype).itemsize
    # Sublane packing: 8 rows for 32-bit, 16 for bf16, 32 for int8/fp8.
    sub = max(8, 32 // max(itemsize, 1))

    L = lane_cols
    rows = pl.cdiv(n, L)
    tm = min(target_rows, _round_up(rows, sub))
    m = _round_up(rows, tm)
    n_pad = m * L

    flat = x.reshape(-1)
    if n_pad != n:
        flat = jnp.pad(flat, (0, n_pad - n))
    x2d = flat.reshape(m, L)

    # Gate stays in f32 on the 32-bit SMEM scalar path.
    g_arr = jnp.reshape(g, (1,)).astype(jnp.float32)

    kernel = partial(_rezero_kernel, fn)
    out2d = pl.pallas_call(
        kernel,
        out_shape=jax.ShapeDtypeStruct((m, L), orig_dtype),
        grid=(m // tm,),
        in_specs=[
            pl.BlockSpec(memory_space=pltpu.SMEM),          # g (f32 scalar)
            pl.BlockSpec((tm, L), lambda i: (i, 0)),        # x tile
        ],
        out_specs=pl.BlockSpec((tm, L), lambda i: (i, 0)),  # out tile
        compiler_params=pltpu.CompilerParams(
            dimension_semantics=("parallel",),
        ),
        cost_estimate=pl.CostEstimate(
            flops=2 * n_pad,
            transcendentals=n_pad,           # fn may be EUP-heavy (e.g. tanh)
            bytes_accessed=2 * n_pad * itemsize,
        ),
    )(g_arr, x2d)

    out_flat = out2d.reshape(-1)
    if n_pad != n:
        out_flat = out_flat[:n]
    return out_flat.reshape(orig_shape)


class Rezero:
    """JAX/Pallas mirror of the PyTorch Rezero module."""

    def __init__(self, fn):
        self.fn = fn
        # nn.Parameter(torch.tensor(0.0)) -> deterministic f32 scalar init at 0.0
        self.g = jnp.array(0.0, dtype=jnp.float32)

    def __call__(self, x):
        return rezero_forward(self.fn, x, self.g)


if __name__ == "__main__":
    key = jax.random.PRNGKey(0)
    # Small NCHW input consistent with an axial-attention wrapper.
    x = jax.random.normal(key, (2, 4, 16, 16), dtype=jnp.float32)

    # The wrapped fn: an elementwise function (stand-in for the wrapped block).
    fn = jnp.tanh

    module = Rezero(fn)

    # Forward pass with g = 0.0 (exact module init): output must be all zeros.
    out = jax.block_until_ready(module(x))
    ref = fn(x) * module.g
    assert out.shape == x.shape and out.dtype == x.dtype
    assert jnp.allclose(out, ref, atol=1e-6)

    # Sanity check of the fused kernel math with a non-zero gate value.
    g_nz = jnp.array(0.37, dtype=jnp.float32)
    out_nz = jax.block_until_ready(rezero_forward(fn, x, g_nz))
    ref_nz = fn(x) * g_nz
    assert jnp.allclose(out_nz, ref_nz, atol=1e-5)

    # bf16 path: gate stays f32, product computed in f32 and cast to bf16.
    x_bf16 = x.astype(jnp.bfloat16)
    out_bf16 = jax.block_until_ready(rezero_forward(fn, x_bf16, g_nz))
    ref_bf16 = (fn(x_bf16.astype(jnp.float32)) * g_nz).astype(jnp.bfloat16)
    assert out_bf16.dtype == jnp.bfloat16
    assert jnp.allclose(out_bf16.astype(jnp.float32),
                        ref_bf16.astype(jnp.float32), atol=2e-2)

    print("KERNEL_OK")
</pallas_src>

<mosaic_0001>
module attributes {stable_mosaic.version = 11 : i64} {
  func.func @_rezero_kernel(%arg0: i32, %arg1: memref<1xf32, #tpu.memory_space<smem>>, %arg2: memref<8x512xf32, #tpu.memory_space<vmem>>, %arg3: memref<8x512xf32, #tpu.memory_space<vmem>>) attributes {dimension_semantics = [#tpu.dimension_semantics<parallel>], iteration_bounds = array<i64: 1>, scalar_prefetch = 0 : i64, scratch_operands = 0 : i64, tpu.core_type = #tpu.core_type<tc>, window_params = [{transform_indices = @transform_0, window_bounds = array<i64: 1>}, {transform_indices = @transform_1, window_bounds = array<i64: 8, 512>}, {transform_indices = @transform_2, window_bounds = array<i64: 8, 512>}]} {
    %c0 = arith.constant 0 : index
    %0 = memref.load %arg1[%c0] : memref<1xf32, #tpu.memory_space<smem>>
    %c0_0 = arith.constant 0 : index
    %c0_1 = arith.constant 0 : index
    %1 = vector.load %arg2[%c0_0, %c0_1] : memref<8x512xf32, #tpu.memory_space<vmem>>, vector<8x512xf32>
    %2 = math.tanh %1 : vector<8x512xf32>
    %3 = vector.broadcast %0 : f32 to vector<8x512xf32>
    %4 = arith.mulf %2, %3 : vector<8x512xf32>
    %c0_2 = arith.constant 0 : index
    %c0_3 = arith.constant 0 : index
    %5 = vector.load %arg3[%c0_2, %c0_3] : memref<8x512xf32, #tpu.memory_space<vmem>>, vector<8x512xf32>
    tpu.vector_store %arg3[%c0_2, %c0_3], %4 {strides = array<i32>} : memref<8x512xf32, #tpu.memory_space<vmem>>, vector<8x512xf32>,
    return
  }
  func.func @transform_0(%arg0: i32) -> i32 {
    %c0_i32 = arith.constant 0 : i32
    %c0_i32_0 = arith.constant 0 : i32
    return %c0_i32 : i32
  }
  func.func @transform_1(%arg0: i32) -> (i32, i32) {
    %c0_i32 = arith.constant 0 : i32
    %c0_i32_0 = arith.constant 0 : i32
    return %arg0, %c0_i32 : i32, i32
  }
  func.func @transform_2(%arg0: i32) -> (i32, i32) {
    %c0_i32 = arith.constant 0 : i32
    %c0_i32_0 = arith.constant 0 : i32
    return %arg0, %c0_i32 : i32, i32
  }
}

</mosaic_0001>

<llo_original>
// kernel: tpu_custom_call.1
$region0: #{tpu_custom_call.1}
  #allocation0 [shape = 'u32[]', space=smem, size = 0x4, offset = 0x4, fixed_abs, tag = 'smem constant byte address 0x4 - core index']
  #allocation1 [shape = 'u32[144,128]{1,0:T(1,128)}', space=vmem, size = 0x12000, scoped, tag = 'internal scratch']
  #allocation2 [shape = 'f32[1]{0:T(128)S(6)}', space=smem, size = 0x200, scoped, tag = 'scoped memory for tpu_custom_call.1']
  %s0 = inlined_call_operand.<no memory space> [shape: f32[1], index: 0, kind: input, shape index: {}]
  %s1 = inlined_call_operand.hbm [shape: f32[8,512], index: 1, kind: input, shape index: {}]
  %s2 = inlined_call_operand.hbm [shape: f32[8,512], index: 2, kind: output, shape index: {}]
  %s3 = sld [smem:[#allocation0]]
  $region22: #{tpu_custom_call.1} parent=0
    _
  %s5 = ssub.s32 1, %s3
  %s6 = scalar_select 0, %s5, %s3
  %7 = sst [smem:[#allocation2]] %s0
  $region1: #{tpu_custom_call.1} parent=0
    #allocation3 [shape = 'u8[16384]{0}', space=vmem, size = 0x4000, scoped, tag = 'input window, operand 1, single buffered']
    #allocation4 [shape = 's32[1]{0}', space=sflag, size = 0x4, scoped, tag = 'scoped memory for tpu_custom_call.1']
    #allocation5 [shape = 's32[1]{0}', space=sflag, size = 0x4, scoped, tag = 'scoped memory for tpu_custom_call.1']
    #allocation6 [shape = 'u8[16384]{0}', space=vmem, size = 0x4000, scoped, tag = 'output window, operand 0, single buffered']
    %8 = vsyncpa [#allocation4], 0
    %9 = vsyncpa [#allocation5], 0
    // Predicated region
    $region2: #{tpu_custom_call.1} parent=1 // pred_check
      _
    $region3: #{tpu_custom_call.1} parent=1 // pred_check_branch
      %11 = sbr.rel (0) target = $region5
    $region4: #{tpu_custom_call.1} parent=1 // pred_region
      _
    $region5: #{tpu_custom_call.1} parent=1 // pred_fallthru
      _
    // Predicated region
    $region6: #{tpu_custom_call.1} parent=1 // pred_check
      _
    $region7: #{tpu_custom_call.1} parent=1 // pred_check_branch
      %13 = sbr.rel (0) target = $region9
    $region8: #{tpu_custom_call.1} parent=1 // pred_region
      %s15 = ssub.s32 512, 512
      %16 = vsyncadd [#allocation4], %s15
      %s18 = sshll.u32 [#allocation3], 4
      %s19 = int_to_ptr.vmem [resolvable:$true] %s18
      %21 = dma.hbm_to_vmem [thread:$0]  %s1, 512, %s19, [#allocation4]
    $region9: #{tpu_custom_call.1} parent=1 // pred_fallthru
      _
    // Predicated region
    $region10: #{tpu_custom_call.1} parent=1 // pred_check
      _
    $region11: #{tpu_custom_call.1} parent=1 // pred_check_branch
      %23 = sbr.rel (0) target = $region13
    $region12: #{tpu_custom_call.1} parent=1 // pred_region
      %24 = dma.done [#allocation4], 512
    $region13: #{tpu_custom_call.1} parent=1 // pred_fallthru
      _
    %s25 = sld [smem:[#allocation2]]
    %v26 = vld [vmem:[#allocation3] sm:$0xff]
    %v27 = vld [vmem:[#allocation3 + $0x8] sm:$0xff]
    %v28 = vld [vmem:[#allocation3 + $0x10] sm:$0xff]
    %v29 = vld [vmem:[#allocation3 + $0x18] sm:$0xff]
    %v30 = vtanh.pop %v26
    %v31 = vtanh.pop %v27
    %v32 = vtanh.pop %v28
    %v33 = vtanh.pop %v29
    %v34 = vstv %s25
    %v35 = vmul.f32 %v30, %v34
    %v36 = vmul.f32 %v31, %v34
    %v37 = vmul.f32 %v32, %v34
    %v38 = vmul.f32 %v33, %v34
    %39 = vst [vmem:[#allocation6] sm:$0xff] %v35
    %40 = vst [vmem:[#allocation6 + $0x8] sm:$0xff] %v36
    %41 = vst [vmem:[#allocation6 + $0x10] sm:$0xff] %v37
    %42 = vst [vmem:[#allocation6 + $0x18] sm:$0xff] %v38
    // Predicated region
    $region14: #{tpu_custom_call.1} parent=1 // pred_check
      _
    $region15: #{tpu_custom_call.1} parent=1 // pred_check_branch
      %44 = sbr.rel (0) target = $region17
    $region16: #{tpu_custom_call.1} parent=1 // pred_region
      %s46 = ssub.s32 512, 512
      %47 = vsyncadd [#allocation5], %s46
      %s49 = sshll.u32 [#allocation6], 4
      %s50 = int_to_ptr.vmem [resolvable:$true] %s49
      %52 = dma.vmem_to_hbm [thread:$0]  %s50, 512, %s2, [#allocation5]
    $region17: #{tpu_custom_call.1} parent=1 // pred_fallthru
      _
    // Predicated region
    $region18: #{tpu_custom_call.1} parent=1 // pred_check
      _
    $region19: #{tpu_custom_call.1} parent=1 // pred_check_branch
      %54 = sbr.rel (0) target = $region21
    $region20: #{tpu_custom_call.1} parent=1 // pred_region
      %55 = dma.done [#allocation5], 512
    $region21: #{tpu_custom_call.1} parent=1 // pred_fallthru
      _
    %56 = vsyncpa [#allocation4], 1
    %57 = vsyncpa [#allocation5], 1

</llo_original>
